<compile_context>
chip_gen: v7x
topology: tpu7x:2x2x1
jax: 0.10.0
libtpu: 0.0.40
codegen_flags: <defaults>
</compile_context>

<pallas_src>
import functools

import jax
import jax.numpy as jnp
from jax.experimental import pallas as pl
from jax.experimental.pallas import tpu as pltpu

LEAKY_ALPHA = 0.2     # `alpha` arg of the module (LeakyReLU negative slope)
LN_EPS = 1e-5         # torch.nn.LayerNorm default eps


def _project_kernel(x_ref, wt_ref, b_ref, a_ref, h_ref, s_ref):
    # h = x @ W^T + b   (W already transposed in the wrapper)
    h = jnp.dot(x_ref[...], wt_ref[...],
                preferred_element_type=jnp.float32) + b_ref[...]          # (TM, Fp)
    # s[:, 0] = h . a1 ,  s[:, 1] = h . a2   (single fused dot, f32)
    s_ref[...] = jnp.dot(h, a_ref[...], preferred_element_type=jnp.float32)
    # h is only consumed by the bf16 spmm in the attention pass
    h_ref[...] = h.astype(jnp.bfloat16)


def _attention_kernel(adj_ref, h_ref, s1_ref, s2_ref, gamma_ref, beta_ref, out_ref,
                      *, alpha, inv_f):
    # score(i, j) = a1.h_i + a2.h_j   -- broadcast only, no in-kernel transpose
    score = s1_ref[...] + s2_ref[...]                                     # (TM, Np) f32
    lrelu = jnp.where(score > 0, score, alpha * score)
    # edge_e = exp(-leakyrelu(score)) on the edges of adj, 0 elsewhere
    e = jnp.where(adj_ref[...] != 0, jnp.exp(-lrelu), 0.0).astype(jnp.bfloat16)
    # h_prime = special_spmm(edge, edge_e, (N, N), h)  ==  e @ h
    hp = jnp.dot(e, h_ref[...], preferred_element_type=jnp.float32)       # (TM, Fp) f32
    # LayerNorm over the real out_features (padded feature columns of hp are exactly 0,
    # so sum/Fout and E[x^2]-mean^2 are exact; padded cols are zeroed by gamma/beta=0).
    mean = jnp.sum(hp, axis=-1, keepdims=True) * inv_f
    ex2 = jnp.sum(hp * hp, axis=-1, keepdims=True) * inv_f
    var = jnp.maximum(ex2 - mean * mean, 0.0)
    y = (hp - mean) * jax.lax.rsqrt(var + LN_EPS) * gamma_ref[...] + beta_ref[...]
    # concat=True path -> ELU
    out_ref[...] = jnp.where(y > 0, y, jnp.expm1(jnp.minimum(y, 0.0)))


def spgat_forward(x, adj, w, b, a, gamma, beta, *,
                  alpha=LEAKY_ALPHA, block_rows=128):
    """x:(N,Fin) adj:(N,N) w:(Fout,Fin) b:(1,Fout)|(Fout,) a:(1,2*Fout)
    gamma/beta:(1,Fout)|(Fout,)  ->  (N, Fout) float32."""
    N, Fin = x.shape
    Fout = w.shape[0]
    TM = block_rows
    assert TM % 8 == 0, "block_rows must be a multiple of 8 (sublane tiling)"
    Np = pl.cdiv(N, TM) * TM                 # rows padded to a tile multiple
    Fp = pl.cdiv(Fout, 128) * 128            # lane-dense feature axis

    f32 = jnp.float32
    a_flat = a.reshape(-1).astype(f32)
    # layout / padding plumbing (tiny XLA ops)
    x_p = jnp.zeros((Np, Fin), f32).at[:N, :].set(x.astype(f32))
    wt_p = jnp.zeros((Fin, Fp), f32).at[:, :Fout].set(w.astype(f32).T)
    b_p = jnp.zeros((1, Fp), f32).at[0, :Fout].set(b.reshape(-1).astype(f32))
    a_p = (jnp.zeros((Fp, 2), f32)
           .at[:Fout, 0].set(a_flat[:Fout])
           .at[:Fout, 1].set(a_flat[Fout:]))
    g_p = jnp.zeros((1, Fp), f32).at[0, :Fout].set(gamma.reshape(-1).astype(f32))
    be_p = jnp.zeros((1, Fp), f32).at[0, :Fout].set(beta.reshape(-1).astype(f32))
    # adjacency travels as an int8 edge mask (the kernel only needs adj != 0)
    adj_p = jnp.zeros((Np, Np), jnp.int8).at[:N, :N].set((adj != 0).astype(jnp.int8))

    grid = (Np // TM,)
    cparams = pltpu.CompilerParams(dimension_semantics=("parallel",))

    # ---- pass 1: projection + attention scores (computed once) ----
    h_bf, s = pl.pallas_call(
        _project_kernel,
        grid=grid,
        in_specs=[
            pl.BlockSpec((TM, Fin), lambda i: (i, 0)),
            pl.BlockSpec((Fin, Fp), lambda i: (0, 0)),
            pl.BlockSpec((1, Fp), lambda i: (0, 0)),
            pl.BlockSpec((Fp, 2), lambda i: (0, 0)),
        ],
        out_specs=(
            pl.BlockSpec((TM, Fp), lambda i: (i, 0)),
            pl.BlockSpec((TM, 2), lambda i: (i, 0)),
        ),
        out_shape=(
            jax.ShapeDtypeStruct((Np, Fp), jnp.bfloat16),
            jax.ShapeDtypeStruct((Np, 2), jnp.float32),
        ),
        compiler_params=cparams,
    )(x_p, wt_p, b_p, a_p)

    s1 = s[:, 0:1]                       # (Np, 1) column -> broadcast along lanes
    s2_row = s[:, 1].reshape(1, Np)      # (1, Np) row    -> tiny wrapper relayout

    # ---- pass 2: masked attention spmm + LayerNorm + ELU, row-tiled ----
    out_p = pl.pallas_call(
        functools.partial(_attention_kernel, alpha=alpha, inv_f=1.0 / Fout),
        grid=grid,
        in_specs=[
            pl.BlockSpec((TM, Np), lambda i: (i, 0)),   # int8 adjacency tile (streamed)
            pl.BlockSpec((Np, Fp), lambda i: (0, 0)),   # full h (bf16), VMEM-resident
            pl.BlockSpec((TM, 1), lambda i: (i, 0)),    # s1 tile
            pl.BlockSpec((1, Np), lambda i: (0, 0)),    # s2 row
            pl.BlockSpec((1, Fp), lambda i: (0, 0)),    # gamma
            pl.BlockSpec((1, Fp), lambda i: (0, 0)),    # beta
        ],
        out_specs=pl.BlockSpec((TM, Fp), lambda i: (i, 0)),
        out_shape=jax.ShapeDtypeStruct((Np, Fp), jnp.float32),
        compiler_params=cparams,
    )(adj_p, h_bf, s1, s2_row, g_p, be_p)

    return out_p[:N, :Fout]


def spgat_reference(x, adj, w, b, a, gamma, beta, alpha=LEAKY_ALPHA):
    """Pure-JAX f32 reference mirroring the PyTorch forward."""
    Fout = w.shape[0]
    h = x @ w.T + b
    a1 = a[:, :Fout].T
    a2 = a[:, Fout:].T
    score = (h @ a1) + (h @ a2).T
    lrelu = jnp.where(score > 0, score, alpha * score)
    e = jnp.where(adj != 0, jnp.exp(-lrelu), 0.0)
    hp = e @ h
    mean = jnp.mean(hp, axis=-1, keepdims=True)
    var = jnp.mean((hp - mean) ** 2, axis=-1, keepdims=True)
    y = (hp - mean) / jnp.sqrt(var + LN_EPS) * gamma + beta
    return jnp.where(y > 0, y, jnp.expm1(jnp.minimum(y, 0.0)))


if __name__ == "__main__":
    N = 256              # number of graph nodes (2 row tiles of 128)
    in_features = 64
    out_features = 32

    key = jax.random.PRNGKey(0)
    kx, kadj, kw, kb, ka = jax.random.split(key, 5)

    # node features and a deterministic sparse-ish adjacency (with self loops)
    x = jax.random.normal(kx, (N, in_features), dtype=jnp.float32)
    adj = (jax.random.uniform(kadj, (N, N)) < 0.3).astype(jnp.float32)
    adj = jnp.minimum(adj + jnp.eye(N, dtype=jnp.float32), 1.0)

    # Linear(in_features, out_features): kaiming_normal_ weight, default bias init
    w = jax.random.normal(kw, (out_features, in_features), dtype=jnp.float32) \
        * jnp.sqrt(2.0 / in_features)
    bound = 1.0 / jnp.sqrt(in_features)
    b = jax.random.uniform(kb, (1, out_features), minval=-bound, maxval=bound,
                           dtype=jnp.float32)

    # a : (1, 2*out_features) kaiming_normal_
    a = jax.random.normal(ka, (1, 2 * out_features), dtype=jnp.float32) \
        * jnp.sqrt(2.0 / (2 * out_features))

    # LayerNorm affine params
    gamma = jnp.ones((1, out_features), dtype=jnp.float32)
    beta = jnp.zeros((1, out_features), dtype=jnp.float32)

    out = spgat_forward(x, adj, w, b, a, gamma, beta)
    out = jax.block_until_ready(out)

    ref = spgat_reference(x, adj, w, b, a, gamma, beta)
    assert out.shape == (N, out_features)
    # e@h uses bf16 operands (f32 accumulation) per the perf review, so compare
    # against the pure-f32 reference with a correspondingly wider tolerance.
    assert jnp.allclose(out, ref, atol=5e-2, rtol=5e-2), "mismatch vs reference"

    print("KERNEL_OK")
</pallas_src>

<mosaic_0001>
module attributes {stable_mosaic.version = 11 : i64} {
  func.func @_project_kernel(%arg0: i32, %arg1: memref<128x64xf32, #tpu.memory_space<vmem>>, %arg2: memref<64x128xf32, #tpu.memory_space<vmem>>, %arg3: memref<1x128xf32, #tpu.memory_space<vmem>>, %arg4: memref<128x2xf32, #tpu.memory_space<vmem>>, %arg5: memref<128x128xbf16, #tpu.memory_space<vmem>>, %arg6: memref<128x2xf32, #tpu.memory_space<vmem>>) attributes {dimension_semantics = [#tpu.dimension_semantics<parallel>], iteration_bounds = array<i64: 2>, scalar_prefetch = 0 : i64, scratch_operands = 0 : i64, tpu.core_type = #tpu.core_type<tc>, window_params = [{transform_indices = @transform_0, window_bounds = array<i64: 128, 64>}, {pipeline_mode = #tpu.pipeline_mode<synchronous>, transform_indices = @transform_1, window_bounds = array<i64: 64, 128>}, {pipeline_mode = #tpu.pipeline_mode<synchronous>, transform_indices = @transform_2, window_bounds = array<i64: 1, 128>}, {pipeline_mode = #tpu.pipeline_mode<synchronous>, transform_indices = @transform_3, window_bounds = array<i64: 128, 2>}, {transform_indices = @transform_4, window_bounds = array<i64: 128, 128>}, {transform_indices = @transform_5, window_bounds = array<i64: 128, 2>}]} {
    %c0 = arith.constant 0 : index
    %c0_0 = arith.constant 0 : index
    %0 = vector.load %arg1[%c0, %c0_0] : memref<128x64xf32, #tpu.memory_space<vmem>>, vector<128x64xf32>
    %c0_1 = arith.constant 0 : index
    %c0_2 = arith.constant 0 : index
    %1 = vector.load %arg2[%c0_1, %c0_2] : memref<64x128xf32, #tpu.memory_space<vmem>>, vector<64x128xf32>
    %cst = arith.constant dense<0.000000e+00> : vector<128x128xf32>
    %2 = tpu.matmul %0, %1, %cst {dimension_numbers = #tpu.dot_dimension_numbers<[1], [0], [0], [1], [0, 0, 1, 1], [], []>} : vector<128x64xf32>, vector<64x128xf32>, vector<128x128xf32> -> vector<128x128xf32>
    %c0_3 = arith.constant 0 : index
    %c0_4 = arith.constant 0 : index
    %3 = vector.load %arg3[%c0_3, %c0_4] : memref<1x128xf32, #tpu.memory_space<vmem>>, vector<1x128xf32>
    %4 = vector.broadcast %3 : vector<1x128xf32> to vector<128x128xf32>
    %5 = arith.addf %2, %4 : vector<128x128xf32>
    %c0_5 = arith.constant 0 : index
    %c0_6 = arith.constant 0 : index
    %6 = vector.load %arg4[%c0_5, %c0_6] : memref<128x2xf32, #tpu.memory_space<vmem>>, vector<128x2xf32>
    %cst_7 = arith.constant dense<0.000000e+00> : vector<128x2xf32>
    %7 = tpu.matmul %5, %6, %cst_7 {dimension_numbers = #tpu.dot_dimension_numbers<[1], [0], [0], [1], [0, 0, 1, 1], [], []>} : vector<128x128xf32>, vector<128x2xf32>, vector<128x2xf32> -> vector<128x2xf32>
    %c0_8 = arith.constant 0 : index
    %c0_9 = arith.constant 0 : index
    %8 = vector.load %arg6[%c0_8, %c0_9] : memref<128x2xf32, #tpu.memory_space<vmem>>, vector<128x2xf32>
    tpu.vector_store %arg6[%c0_8, %c0_9], %7 {strides = array<i32>} : memref<128x2xf32, #tpu.memory_space<vmem>>, vector<128x2xf32>,
    %9 = arith.truncf %5 : vector<128x128xf32> to vector<128x128xbf16>
    %c0_10 = arith.constant 0 : index
    %c0_11 = arith.constant 0 : index
    %10 = vector.load %arg5[%c0_10, %c0_11] : memref<128x128xbf16, #tpu.memory_space<vmem>>, vector<128x128xbf16>
    tpu.vector_store %arg5[%c0_10, %c0_11], %9 {strides = array<i32>} : memref<128x128xbf16, #tpu.memory_space<vmem>>, vector<128x128xbf16>,
    return
  }
  func.func @transform_0(%arg0: i32) -> (i32, i32) {
    %c0_i32 = arith.constant 0 : i32
    %c0_i32_0 = arith.constant 0 : i32
    return %arg0, %c0_i32 : i32, i32
  }
  func.func @transform_1(%arg0: i32) -> (i32, i32) {
    %c0_i32 = arith.constant 0 : i32
    %c0_i32_0 = arith.constant 0 : i32
    %c0_i32_1 = arith.constant 0 : i32
    return %c0_i32, %c0_i32_0 : i32, i32
  }
  func.func @transform_2(%arg0: i32) -> (i32, i32) {
    %c0_i32 = arith.constant 0 : i32
    %c0_i32_0 = arith.constant 0 : i32
    %c0_i32_1 = arith.constant 0 : i32
    return %c0_i32, %c0_i32_0 : i32, i32
  }
  func.func @transform_3(%arg0: i32) -> (i32, i32) {
    %c0_i32 = arith.constant 0 : i32
    %c0_i32_0 = arith.constant 0 : i32
    %c0_i32_1 = arith.constant 0 : i32
    return %c0_i32, %c0_i32_0 : i32, i32
  }
  func.func @transform_4(%arg0: i32) -> (i32, i32) {
    %c0_i32 = arith.constant 0 : i32
    %c0_i32_0 = arith.constant 0 : i32
    return %arg0, %c0_i32 : i32, i32
  }
  func.func @transform_5(%arg0: i32) -> (i32, i32) {
    %c0_i32 = arith.constant 0 : i32
    %c0_i32_0 = arith.constant 0 : i32
    return %arg0, %c0_i32 : i32, i32
  }
}

</mosaic_0001>

<llo_original>
// kernel: tpu_custom_call.1
$region0: #{tpu_custom_call.1}
  #allocation0 [shape = 'u32[]', space=smem, size = 0x4, offset = 0x4, fixed_abs, tag = 'smem constant byte address 0x4 - core index']
  #allocation1 [shape = 'u32[144,128]{1,0:T(1,128)}', space=vmem, size = 0x12000, scoped, tag = 'internal scratch']
  %s0 = inlined_call_operand.vmem [shape: f32[256,64], index: 0, kind: input, shape index: {}]
  %s1 = inlined_call_operand.vmem [shape: f32[64,128], index: 1, kind: input, shape index: {}]
  %s2 = inlined_call_operand.vmem [shape: f32[1,128], index: 2, kind: input, shape index: {}]
  %s3 = inlined_call_operand.vmem [shape: f32[128,2], index: 3, kind: input, shape index: {}]
  %s4 = inlined_call_operand.hbm [shape: bf16[256,128], index: 4, kind: output, shape index: {0}]
  %s5 = inlined_call_operand.vmem [shape: f32[256,2], index: 5, kind: output, shape index: {1}]
  %6 = xla_tuple %s4, %s5
  %s7 = sld [smem:[#allocation0]]
  $region57: #{tpu_custom_call.1} parent=0
    _
  %s9 = ssub.s32 1, %s7
  %s10 = scalar_select 0, %s9, %s7
  $region1: #{tpu_custom_call.1} parent=0
    #allocation2 [shape = 'u8[65536]{0}', space=vmem, size = 0x10000, scoped, tag = 'output window, operand 0']
    #allocation3 [shape = 's32[2]{0}', space=sflag, size = 0x8, scoped, tag = 'scoped memory for tpu_custom_call.1']
    %11 = vsyncpa [#allocation3], 0
    %s12 = scalar_lea.sflag [#allocation3], 1
    %13 = vsyncpa %s12, 0
    loop: start=0, step=1, limit=4
    $region2: #{tpu_custom_call.1} parent=1 // loop_pre_header
      _
    $region3: #{tpu_custom_call.1} parent=1 // loop_header
      %s15 = sphi 0, %s19
      %p16 = scmp.ge.s32.totalorder %s15, 4
      %s25 = sphi 0, %s27
      %s28 = sphi 0, %s25
      %s29 = sphi 0, %s28
      %s45 = sphi 0, %s29
      %s49 = sphi 0, %s49
      %s51 = sphi 0, %s49
      %s52 = sphi 0, %s51
      %s66 = sphi 0, %s52
      %s70 = sphi 0, %s70
      %s72 = sphi 0, %s70
      %s73 = sphi 0, %s72
      %s87 = sphi 0, %s73
      %s91 = sphi 0, %s91
      %s93 = sphi 0, %s91
      %s94 = sphi 0, %s93
      %s108 = sphi 0, %s94
      %s114 = sphi 0, %s116
      %s117 = sphi 0, %s114
      %s118 = sphi 0, %s117
      %s134 = sphi 0, %s118
      %s140 = sphi 0, %s142
      %s143 = sphi 0, %s140
      %s144 = sphi 0, %s143
      %s160 = sphi 0, %s144
    $region4: #{tpu_custom_call.1} parent=1 // loop_header_branch
      %18 = sbr.rel (%p16) target = $region8
    $region5: #{tpu_custom_call.1} parent=1 // loop_body
      %s20 = ssub.s32 %s15, 1
      %s21 = ssub.s32 %s15, 2
      %s22 = sadd.s32 %s15, 1
      %s23 = ssub.s32 %s15, %s22
      %p24 = scmp.eq.s32.totalorder %s23, 0
      %s26 = sadd.s32 %s25, 1
      %s27 = scalar_select %p24, %s25, %s26
      %p30 = pneg %p24
      %p31 = scmp.eq.s32.totalorder %s15, 1
      %p32 = por %p30, %p31
      %p33 = scmp.ne.s32.totalorder %s25, %s28
      %p34 = scmp.eq.s32.totalorder %s15, 0
      %p35 = por %p33, %p34
      %p36 = scmp.ne.s32.totalorder %s25, %s28
      %p37 = scmp.eq.s32.totalorder %s20, 1
      %p38 = por %p36, %p37
      %p39 = scmp.ne.s32.totalorder %s28, %s29
      %p40 = scmp.eq.s32.totalorder %s20, 0
      %p41 = por %p39, %p40
      %p42 = scmp.ne.s32.totalorder %s28, %s29
      %p43 = scmp.eq.s32.totalorder %s21, 1
      %p44 = por %p42, %p43
      %p46 = scmp.ne.s32.totalorder %s29, %s45
      %p47 = scmp.eq.s32.totalorder %s21, 0
      %p48 = por %p46, %p47
      %s50 = sadd.s32 %s49, 1
      %p53 = scmp.eq.s32.totalorder %s15, 1
      %p54 = scmp.ne.s32.totalorder %s49, %s51
      %p55 = scmp.eq.s32.totalorder %s15, 0
      %p56 = por %p54, %p55
      %p57 = scmp.ne.s32.totalorder %s49, %s51
      %p58 = scmp.eq.s32.totalorder %s20, 1
      %p59 = por %p57, %p58
      %p60 = scmp.ne.s32.totalorder %s51, %s52
      %p61 = scmp.eq.s32.totalorder %s20, 0
      %p62 = por %p60, %p61
      %p63 = scmp.ne.s32.totalorder %s51, %s52
      %p64 = scmp.eq.s32.totalorder %s21, 1
      %p65 = por %p63, %p64
      %p67 = scmp.ne.s32.totalorder %s52, %s66
      %p68 = scmp.eq.s32.totalorder %s21, 0
      %p69 = por %p67, %p68
      %s71 = sadd.s32 %s70, 1
      %p74 = scmp.eq.s32.totalorder %s15, 1
      %p75 = scmp.ne.s32.totalorder %s70, %s72
      %p76 = scmp.eq.s32.totalorder %s15, 0
      %p77 = por %p75, %p76
      %p78 = scmp.ne.s32.totalorder %s70, %s72
      %p79 = scmp.eq.s32.totalorder %s20, 1
      %p80 = por %p78, %p79
      %p81 = scmp.ne.s32.totalorder %s72, %s73
      %p82 = scmp.eq.s32.totalorder %s20, 0
      %p83 = por %p81, %p82
      %p84 = scmp.ne.s32.totalorder %s72, %s73
      %p85 = scmp.eq.s32.totalorder %s21, 1
      %p86 = por %p84, %p85
      %p88 = scmp.ne.s32.totalorder %s73, %s87
      %p89 = scmp.eq.s32.totalorder %s21, 0
      %p90 = por %p88, %p89
      %s92 = sadd.s32 %s91, 1
      %p95 = scmp.eq.s32.totalorder %s15, 1
      %p96 = scmp.ne.s32.totalorder %s91, %s93
      %p97 = scmp.eq.s32.totalorder %s15, 0
      %p98 = por %p96, %p97
      %p99 = scmp.ne.s32.totalorder %s91, %s93
      %p100 = scmp.eq.s32.totalorder %s20, 1
      %p101 = por %p99, %p100
      %p102 = scmp.ne.s32.totalorder %s93, %s94
      %p103 = scmp.eq.s32.totalorder %s20, 0
      %p104 = por %p102, %p103
      %p105 = scmp.ne.s32.totalorder %s93, %s94
      %p106 = scmp.eq.s32.totalorder %s21, 1
      %p107 = por %p105, %p106
      %p109 = scmp.ne.s32.totalorder %s94, %s108
      %p110 = scmp.eq.s32.totalorder %s21, 0
      %p111 = por %p109, %p110
      %s112 = ssub.s32 %s15, %s22
      %p113 = scmp.eq.s32.totalorder %s112, 0
      %s115 = sadd.s32 %s114, 1
      %s116 = scalar_select %p113, %s114, %s115
      %p119 = pneg %p113
      %p120 = scmp.eq.s32.totalorder %s15, 1
      %p121 = por %p119, %p120
      %p122 = scmp.ne.s32.totalorder %s114, %s117
      %p123 = scmp.eq.s32.totalorder %s15, 0
      %p124 = por %p122, %p123
      %p125 = scmp.ne.s32.totalorder %s114, %s117
      %p126 = scmp.eq.s32.totalorder %s20, 1
      %p127 = por %p125, %p126
      %p128 = scmp.ne.s32.totalorder %s117, %s118
      %p129 = scmp.eq.s32.totalorder %s20, 0
      %p130 = por %p128, %p129
      %p131 = scmp.ne.s32.totalorder %s117, %s118
      %p132 = scmp.eq.s32.totalorder %s21, 1
      %p133 = por %p131, %p132
      %p135 = scmp.ne.s32.totalorder %s118, %s134
      %p136 = scmp.eq.s32.totalorder %s21, 0
      %p137 = por %p135, %p136
      %s138 = ssub.s32 %s15, %s22
      %p139 = scmp.eq.s32.totalorder %s138, 0
      %s141 = sadd.s32 %s140, 1
      %s142 = scalar_select %p139, %s140, %s141
      %p145 = pneg %p139
      %p146 = scmp.eq.s32.totalorder %s15, 1
      %p147 = por %p145, %p146
      %p148 = scmp.ne.s32.totalorder %s140, %s143
      %p149 = scmp.eq.s32.totalorder %s15, 0
      %p150 = por %p148, %p149
      %p151 = scmp.ne.s32.totalorder %s140, %s143
      %p152 = scmp.eq.s32.totalorder %s20, 1
      %p153 = por %p151, %p152
      %p154 = scmp.ne.s32.totalorder %s143, %s144
      %p155 = scmp.eq.s32.totalorder %s20, 0
      %p156 = por %p154, %p155
      %p157 = scmp.ne.s32.totalorder %s143, %s144
      %p158 = scmp.eq.s32.totalorder %s21, 1
      %p159 = por %p157, %p158
      %p161 = scmp.ne.s32.totalorder %s144, %s160
      %p162 = scmp.eq.s32.totalorder %s21, 0
      %p163 = por %p161, %p162
      %p164 = scmp.le.s32.totalorder 1, %s15
      %p165 = scmp.lt.s32.totalorder %s15, 3
      %p166 = pnand %p164, %p165
      %p167 = pneg %p166
      // Predicated region
      $region9: #{tpu_custom_call.1} parent=5 // pred_check
        _
      $region10: #{tpu_custom_call.1} parent=5 // pred_check_branch
        %169 = sbr.rel (%p166) target = $region12
      $region11: #{tpu_custom_call.1} parent=5 // pred_region
        %s170 = ssub.s32 %s15, 1
        // Predicated region
        $region13: #{tpu_custom_call.1} parent=11 // pred_check
          %p171 = pneg %p62
        $region14: #{tpu_custom_call.1} parent=11 // pred_check_branch
          %173 = sbr.rel (%p171) target = $region16
        $region15: #{tpu_custom_call.1} parent=11 // pred_region
          _
        $region16: #{tpu_custom_call.1} parent=11 // pred_fallthru
          _
        // Predicated region
        $region17: #{tpu_custom_call.1} parent=11 // pred_check
          %p174 = pneg %p83
        $region18: #{tpu_custom_call.1} parent=11 // pred_check_branch
          %176 = sbr.rel (%p174) target = $region20
        $region19: #{tpu_custom_call.1} parent=11 // pred_region
          _
        $region20: #{tpu_custom_call.1} parent=11 // pred_fallthru
          _
        // Predicated region
        $region21: #{tpu_custom_call.1} parent=11 // pred_check
          %p177 = pneg %p104
        $region22: #{tpu_custom_call.1} parent=11 // pred_check_branch
          %179 = sbr.rel (%p177) target = $region24
        $region23: #{tpu_custom_call.1} parent=11 // pred_region
          _
        $region24: #{tpu_custom_call.1} parent=11 // pred_fallthru
          _
      $region12: #{tpu_custom_call.1} parent=5 // pred_fallthru
        _
      %p180 = scmp.lt.s32.totalorder %s15, 2
      // Predicated region
      $region25: #{tpu_custom_call.1} parent=5 // pred_check
        %p181 = pneg %p180
      $region26: #{tpu_custom_call.1} parent=5 // pred_check_branch
        %183 = sbr.rel (%p181) target = $region28
      $region27: #{tpu_custom_call.1} parent=5 // pred_region
        // Predicated region
        $region29: #{tpu_custom_call.1} parent=27 // pred_check
          %p184 = pneg %p35
        $region30: #{tpu_custom_call.1} parent=27 // pred_check_branch
          %186 = sbr.rel (%p184) target = $region32
        $region31: #{tpu_custom_call.1} parent=27 // pred_region
          %s187 = smul.u32 16, %s15
          %p188 = scmp.lt.s32.totalorder %s187, 31
          %s189 = scalar_select %p188, %s187, 31
          %s190 = smul.addr %s189, 8
          %s191 = scalar_lea.vmem %s0, %s190
          %s192 = smul.u32 16, %s15
        $region32: #{tpu_custom_call.1} parent=27 // pred_fallthru
          _
      $region28: #{tpu_custom_call.1} parent=5 // pred_fallthru
        _
      %p193 = scmp.le.s32.totalorder 1, %s15
      %p194 = scmp.lt.s32.totalorder %s15, 3
      %p195 = pnand %p193, %p194
      %p196 = pneg %p195
      // Predicated region
      $region33: #{tpu_custom_call.1} parent=5 // pred_check
        _
      $region34: #{tpu_custom_call.1} parent=5 // pred_check_branch
        %198 = sbr.rel (%p195) target = $region36
      $region35: #{tpu_custom_call.1} parent=5 // pred_region
        %s199 = ssub.s32 %s15, 1
        %s200 = smul.u32 16, %s20
        %p201 = scmp.lt.s32.totalorder %s200, 31
        %s202 = scalar_select %p201, %s200, 31
        %s203 = smul.addr %s202, 8
        %s204 = scalar_lea.vmem %s0, %s203
        %p205 = pneg %p41
        %p206 = pneg %p38
        %p207 = pneg %p62
        %p208 = pneg %p59
        %p209 = pneg %p83
        %p210 = pneg %p80
        %p211 = pneg %p104
        %p212 = pneg %p101
        %p213 = pneg %p130
        %p214 = pneg %p127
        %s215 = sand.u32 %s117, 1
        %s216 = scalar_lea.sflag [#allocation3], %s215
        %s217 = sand.u32 %s117, 1
        %s218 = smul.addr %s217, 64
        %s219 = scalar_lea.vmem [#allocation2], %s218
        %p220 = pneg %p156
        %p221 = pneg %p153
        %s222 = smul.u32 16, %s20
        %p223 = scmp.lt.s32.totalorder %s222, 31
        %s224 = scalar_select %p223, %s222, 31
        %s225 = smul.addr %s224, 8
        %s226 = scalar_lea.vmem %s5, %s225
        %s227 = smul.u32 16, %s20
        %p228 = scmp.lt.s32.totalorder %s227, 31
        %s229 = scalar_select %p228, %s227, 31
        %s230 = smul.addr %s229, 8
        %s231 = scalar_lea.vmem %s0, %s230
        %s232 = smul.u32 16, %s20
        %s233 = smul.u32 16, %s20
        %s234 = smul.u32 16, %s20
        %p235 = scmp.lt.s32.totalorder %s234, 31
        %s236 = scalar_select %p235, %s234, 31
        %s237 = smul.addr %s236, 8
        %s238 = scalar_lea.vmem %s5, %s237
        %s239 = smul.u32 16, %s20
        %v240 = vld [vmem:[%s231] sm:$0xff]
        %v241 = vld [vmem:[%s231 + $0x8] sm:$0xff]
        %v242 = vld [vmem:[%s231 + $0x10] sm:$0xff]
        %v243 = vld [vmem:[%s231 + $0x18] sm:$0xff]
        %v244 = vld [vmem:[%s231 + $0x20] sm:$0xff]
        %v245 = vld [vmem:[%s231 + $0x28] sm:$0xff]
        %v246 = vld [vmem:[%s231 + $0x30] sm:$0xff]
        %v247 = vld [vmem:[%s231 + $0x38] sm:$0xff]
        %v248 = vld [vmem:[%s231 + $0x40] sm:$0xff]
        %v249 = vld [vmem:[%s231 + $0x48] sm:$0xff]
        %v250 = vld [vmem:[%s231 + $0x50] sm:$0xff]
        %v251 = vld [vmem:[%s231 + $0x58] sm:$0xff]
        %v252 = vld [vmem:[%s231 + $0x60] sm:$0xff]
        %v253 = vld [vmem:[%s231 + $0x68] sm:$0xff]
        %v254 = vld [vmem:[%s231 + $0x70] sm:$0xff]
        %v255 = vld [vmem:[%s231 + $0x78] sm:$0xff]
        %v256 = vld [vmem:[%s1] sm:$0xff]
        %v257 = vld [vmem:[%s1 + $0x8] sm:$0xff]
        %v258 = vld [vmem:[%s1 + $0x10] sm:$0xff]
        %v259 = vld [vmem:[%s1 + $0x18] sm:$0xff]
        %v260 = vld [vmem:[%s1 + $0x20] sm:$0xff]
        %v261 = vld [vmem:[%s1 + $0x28] sm:$0xff]
        %v262 = vld [vmem:[%s1 + $0x30] sm:$0xff]
        %v263 = vld [vmem:[%s1 + $0x38] sm:$0xff]
        %v264 = vld [vmem:[%s2] sm:$0x1]
        %v266 = vlaneseq
        %v267 = vshrl.u32 %v266, 7
        %v268 = vsub.s32 0, %v267
        %v269 = vrot.slane %v264, %v268
        %vm271 = vcmask 523264
        %v273 = vsel %vm271, %v240, 0
        %v276 = vsel %vm271, %v241, 0
        %v279 = vsel %vm271, %v242, 0
        %v282 = vsel %vm271, %v243, 0
        %v285 = vsel %vm271, %v244, 0
        %v288 = vsel %vm271, %v245, 0
        %v291 = vsel %vm271, %v246, 0
        %v294 = vsel %vm271, %v247, 0
        %v297 = vsel %vm271, %v248, 0
        %v300 = vsel %vm271, %v249, 0
        %v303 = vsel %vm271, %v250, 0
        %v306 = vsel %vm271, %v251, 0
        %v309 = vsel %vm271, %v252, 0
        %v312 = vsel %vm271, %v253, 0
        %v315 = vsel %vm271, %v254, 0
        %v318 = vsel %vm271, %v255, 0
        %320 = vmatprep.subr.mxu0 0.0
        %321 = vmatpush1.msra.mxu0 %v256
        %322 = vmatprep.subr.mxu0 0.0
        %323 = vmatpush1.msra.mxu0 %v257
        %324 = vmatprep.subr.mxu0 0.0
        %325 = vmatpush1.msra.mxu0 %v258
        %326 = vmatprep.subr.mxu0 0.0
        %327 = vmatpush1.msra.mxu0 %v259
        %328 = vmatprep.subr.mxu0 0.0
        %329 = vmatpush1.msra.mxu0 %v260
        %330 = vmatprep.subr.mxu0 0.0
        %331 = vmatpush1.msra.mxu0 %v261
        %332 = vmatprep.subr.mxu0 0.0
        %333 = vmatpush1.msra.mxu0 %v262
        %334 = vmatprep.subr.mxu0 0.0
        %335 = vmatpush1.msra.mxu0 %v263
        %336 = vmatprep.subr.mxu0 0.0
        %337 = vmatpush1.msra.mxu0 0.0
        %338 = vmatprep.subr.mxu0 0.0
        %339 = vmatpush1.msra.mxu0 0.0
        %340 = vmatprep.subr.mxu0 0.0
        %341 = vmatpush1.msra.mxu0 0.0
        %342 = vmatprep.subr.mxu0 0.0
        %343 = vmatpush1.msra.mxu0 0.0
        %344 = vmatprep.subr.mxu0 0.0
        %345 = vmatpush1.msra.mxu0 0.0
        %346 = vmatprep.subr.mxu0 0.0
        %347 = vmatpush1.msra.mxu0 0.0
        %348 = vmatprep.subr.mxu0 0.0
        %349 = vmatpush1.msra.mxu0 0.0
        %350 = vmatprep.subr.mxu0 0.0
        %351 = vmatpush1.msra.mxu0 0.0
        %352 = vmatprep.subr.mxu0 0.0
        %353 = vmatpush1.msra.mxu0 0.0
        %354 = vmatprep.subr.mxu0 0.0
        %355 = vmatpush1.msra.mxu0 0.0
        %356 = vmatprep.subr.mxu0 0.0
        %357 = vmatpush1.msra.mxu0 0.0
        %358 = vmatprep.subr.mxu0 0.0
        %359 = vmatpush1.msra.mxu0 0.0
        %360 = vmatprep.subr.mxu0 0.0
        %361 = vmatpush1.msra.mxu0 0.0
        %362 = vmatprep.subr.mxu0 0.0
        %363 = vmatpush1.msra.mxu0 0.0
        %364 = vmatprep.subr.mxu0 0.0
        %365 = vmatpush1.msra.mxu0 0.0
        %366 = vmatprep.subr.mxu0 0.0
        %367 = vmatpush1.msra.mxu0 0.0
        %368 = vmatprep.subr.mxu0 0.0
        %369 = vmatpush1.msra.mxu0 0.0
        %370 = vmatprep.subr.mxu0 0.0
        %371 = vmatpush1.msra.mxu0 0.0
        %372 = vmatprep.subr.mxu0 0.0
        %373 = vmatpush1.msra.mxu0 0.0
        %374 = vmatprep.subr.mxu0 0.0
        %375 = vmatpush1.msra.mxu0 0.0
        %376 = vmatprep.subr.mxu0 0.0
        %377 = vmatpush1.msra.mxu0 0.0
        %378 = vmatprep.subr.mxu0 0.0
        %379 = vmatpush1.msra.mxu0 0.0
        %380 = vmatprep.subr.mxu0 0.0
        %381 = vmatpush1.msra.mxu0 0.0
        %382 = vmatprep.subr.mxu0 0.0
        %383 = vmatpush1.msra.mxu0 0.0
        %384 = vmatprep.mubr.f32.mxu0 0.0
        %385 = vmatmul.mubr.f32.gmra.mrb[0].mxu0 %v273
        %v386 = vpop.f32.mrb[0].mxu0
        %v387 = vadd.f32 %v269, %v386
        %v388 = vpop.f32.mrb[0].mxu0
        %389 = vmatprep.mubr.f32.mxu0 0.0
        %390 = vmatmul.mubr.f32.gmra.mrb[0].mxu0 %v276
        %v391 = vpop.f32.mrb[0].mxu0
        %v392 = vadd.f32 %v269, %v391
        %v393 = vpop.f32.mrb[0].mxu0
        %394 = vmatprep.mubr.f32.mxu0 0.0
        %395 = vmatmul.mubr.f32.gmra.mrb[0].mxu0 %v279
        %v396 = vpop.f32.mrb[0].mxu0
        %v397 = vadd.f32 %v269, %v396
        %v398 = vpop.f32.mrb[0].mxu0
        %399 = vmatprep.mubr.f32.mxu0 0.0
        %400 = vmatmul.mubr.f32.gmra.mrb[0].mxu0 %v282
        %v401 = vpop.f32.mrb[0].mxu0
        %v402 = vadd.f32 %v269, %v401
        %v403 = vpop.f32.mrb[0].mxu0
        %404 = vmatprep.mubr.f32.mxu0 0.0
        %405 = vmatmul.mubr.f32.gmra.mrb[0].mxu0 %v285
        %v406 = vpop.f32.mrb[0].mxu0
        %v407 = vadd.f32 %v269, %v406
        %v408 = vpop.f32.mrb[0].mxu0
        %409 = vmatprep.mubr.f32.mxu0 0.0
        %410 = vmatmul.mubr.f32.gmra.mrb[0].mxu0 %v288
        %v411 = vpop.f32.mrb[0].mxu0
        %v412 = vadd.f32 %v269, %v411
        %v413 = vpop.f32.mrb[0].mxu0
        %414 = vmatprep.mubr.f32.mxu0 0.0
        %415 = vmatmul.mubr.f32.gmra.mrb[0].mxu0 %v291
        %v416 = vpop.f32.mrb[0].mxu0
        %v417 = vadd.f32 %v269, %v416
        %v418 = vpop.f32.mrb[0].mxu0
        %419 = vmatprep.mubr.f32.mxu0 0.0
        %420 = vmatmul.mubr.f32.gmra.mrb[0].mxu0 %v294
        %v421 = vpop.f32.mrb[0].mxu0
        %v422 = vadd.f32 %v269, %v421
        %v423 = vpop.f32.mrb[0].mxu0
        %424 = vmatprep.mubr.f32.mxu0 0.0
        %425 = vmatmul.mubr.f32.gmra.mrb[0].mxu0 %v297
        %v426 = vpop.f32.mrb[0].mxu0
        %v427 = vadd.f32 %v269, %v426
        %v428 = vpop.f32.mrb[0].mxu0
        %429 = vmatprep.mubr.f32.mxu0 0.0
        %430 = vmatmul.mubr.f32.gmra.mrb[0].mxu0 %v300
        %v431 = vpop.f32.mrb[0].mxu0
        %v432 = vadd.f32 %v269, %v431
        %v433 = vpop.f32.mrb[0].mxu0
        %434 = vmatprep.mubr.f32.mxu0 0.0
        %435 = vmatmul.mubr.f32.gmra.mrb[0].mxu0 %v303
        %v436 = vpop.f32.mrb[0].mxu0
        %v437 = vadd.f32 %v269, %v436
        %v438 = vpop.f32.mrb[0].mxu0
        %439 = vmatprep.mubr.f32.mxu0 0.0
        %440 = vmatmul.mubr.f32.gmra.mrb[0].mxu0 %v306
        %v441 = vpop.f32.mrb[0].mxu0
        %v442 = vadd.f32 %v269, %v441
        %v443 = vpop.f32.mrb[0].mxu0
        %444 = vmatprep.mubr.f32.mxu0 0.0
        %445 = vmatmul.mubr.f32.gmra.mrb[0].mxu0 %v309
        %v446 = vpop.f32.mrb[0].mxu0
        %v447 = vadd.f32 %v269, %v446
        %v448 = vpop.f32.mrb[0].mxu0
        %449 = vmatprep.mubr.f32.mxu0 0.0
        %450 = vmatmul.mubr.f32.gmra.mrb[0].mxu0 %v312
        %v451 = vpop.f32.mrb[0].mxu0
        %v452 = vadd.f32 %v269, %v451
        %v453 = vpop.f32.mrb[0].mxu0
        %454 = vmatprep.mubr.f32.mxu0 0.0
        %455 = vmatmul.mubr.f32.gmra.mrb[0].mxu0 %v315
        %v456 = vpop.f32.mrb[0].mxu0
        %v457 = vadd.f32 %v269, %v456
        %v458 = vpop.f32.mrb[0].mxu0
        %459 = vmatprep.mubr.f32.mxu0 0.0
        %460 = vmatmul.mubr.f32.gmra.mrb[0].mxu0 %v318
        %v461 = vpop.f32.mrb[0].mxu0
        %v462 = vadd.f32 %v269, %v461
        %v463 = vpop.f32.mrb[0].mxu0
        %464 = vdwg.mxu0
        %v465 = vld [vmem:[%s3] sm:$0xff]
        %v466 = vld [vmem:[%s3 + $0x8] sm:$0xff]
        %v467 = vld [vmem:[%s3 + $0x10] sm:$0xff]
        %v468 = vld [vmem:[%s3 + $0x18] sm:$0xff]
        %v469 = vld [vmem:[%s3 + $0x20] sm:$0xff]
        %v470 = vld [vmem:[%s3 + $0x28] sm:$0xff]
        %v471 = vld [vmem:[%s3 + $0x30] sm:$0xff]
        %v472 = vld [vmem:[%s3 + $0x38] sm:$0xff]
        %v473 = vld [vmem:[%s3 + $0x40] sm:$0xff]
        %v474 = vld [vmem:[%s3 + $0x48] sm:$0xff]
        %v475 = vld [vmem:[%s3 + $0x50] sm:$0xff]
        %v476 = vld [vmem:[%s3 + $0x58] sm:$0xff]
        %v477 = vld [vmem:[%s3 + $0x60] sm:$0xff]
        %v478 = vld [vmem:[%s3 + $0x68] sm:$0xff]
        %v479 = vld [vmem:[%s3 + $0x70] sm:$0xff]
        %v480 = vld [vmem:[%s3 + $0x78] sm:$0xff]
        %481 = vmatprep.subr.mxu0 0.0
        %482 = vmatpush1.msra.mxu0 %v465
        %483 = vmatprep.subr.mxu0 0.0
        %484 = vmatpush1.msra.mxu0 %v466
        %485 = vmatprep.subr.mxu0 0.0
        %486 = vmatpush1.msra.mxu0 %v467
        %487 = vmatprep.subr.mxu0 0.0
        %488 = vmatpush1.msra.mxu0 %v468
        %489 = vmatprep.subr.mxu0 0.0
        %490 = vmatpush1.msra.mxu0 %v469
        %491 = vmatprep.subr.mxu0 0.0
        %492 = vmatpush1.msra.mxu0 %v470
        %493 = vmatprep.subr.mxu0 0.0
        %494 = vmatpush1.msra.mxu0 %v471
        %495 = vmatprep.subr.mxu0 0.0
        %496 = vmatpush1.msra.mxu0 %v472
        %497 = vmatprep.subr.mxu0 0.0
        %498 = vmatpush1.msra.mxu0 %v473
        %499 = vmatprep.subr.mxu0 0.0
        %500 = vmatpush1.msra.mxu0 %v474
        %501 = vmatprep.subr.mxu0 0.0
        %502 = vmatpush1.msra.mxu0 %v475
        %503 = vmatprep.subr.mxu0 0.0
        %504 = vmatpush1.msra.mxu0 %v476
        %505 = vmatprep.subr.mxu0 0.0
        %506 = vmatpush1.msra.mxu0 %v477
        %507 = vmatprep.subr.mxu0 0.0
        %508 = vmatpush1.msra.mxu0 %v478
        %509 = vmatprep.subr.mxu0 0.0
        %510 = vmatpush1.msra.mxu0 %v479
        %511 = vmatprep.subr.mxu0 0.0
        %512 = vmatpush1.msra.mxu0 %v480
        %513 = vmatprep.subr.mxu0 0.0
        %514 = vmatpush1.msra.mxu0 0.0
        %515 = vmatprep.subr.mxu0 0.0
        %516 = vmatpush1.msra.mxu0 0.0
        %517 = vmatprep.subr.mxu0 0.0
        %518 = vmatpush1.msra.mxu0 0.0
        %519 = vmatprep.subr.mxu0 0.0
        %520 = vmatpush1.msra.mxu0 0.0
        %521 = vmatprep.subr.mxu0 0.0
        %522 = vmatpush1.msra.mxu0 0.0
        %523 = vmatprep.subr.mxu0 0.0
        %524 = vmatpush1.msra.mxu0 0.0
        %525 = vmatprep.subr.mxu0 0.0
        %526 = vmatpush1.msra.mxu0 0.0
        %527 = vmatprep.subr.mxu0 0.0
        %528 = vmatpush1.msra.mxu0 0.0
        %529 = vmatprep.subr.mxu0 0.0
        %530 = vmatpush1.msra.mxu0 0.0
        %531 = vmatprep.subr.mxu0 0.0
        %532 = vmatpush1.msra.mxu0 0.0
        %533 = vmatprep.subr.mxu0 0.0
        %534 = vmatpush1.msra.mxu0 0.0
        %535 = vmatprep.subr.mxu0 0.0
        %536 = vmatpush1.msra.mxu0 0.0
        %537 = vmatprep.subr.mxu0 0.0
        %538 = vmatpush1.msra.mxu0 0.0
        %539 = vmatprep.subr.mxu0 0.0
        %540 = vmatpush1.msra.mxu0 0.0
        %541 = vmatprep.subr.mxu0 0.0
        %542 = vmatpush1.msra.mxu0 0.0
        %543 = vmatprep.subr.mxu0 0.0
        %544 = vmatpush1.msra.mxu0 0.0
        %545 = vmatprep.mubr.f32.mxu0 0.0
        %546 = vmatmul.mubr.f32.gmra.mrb[0].mxu0 %v387
        %v547 = vpop.f32.mrb[0].mxu0
        %v548 = vadd.f32 0.0, %v547
        %v549 = vpop.f32.mrb[0].mxu0
        %550 = vmatprep.mubr.f32.mxu0 0.0
        %551 = vmatmul.mubr.f32.gmra.mrb[0].mxu0 %v392
        %v552 = vpop.f32.mrb[0].mxu0
        %v553 = vadd.f32 0.0, %v552
        %v554 = vpop.f32.mrb[0].mxu0
        %555 = vmatprep.mubr.f32.mxu0 0.0
        %556 = vmatmul.mubr.f32.gmra.mrb[0].mxu0 %v397
        %v557 = vpop.f32.mrb[0].mxu0
        %v558 = vadd.f32 0.0, %v557
        %v559 = vpop.f32.mrb[0].mxu0
        %560 = vmatprep.mubr.f32.mxu0 0.0
        %561 = vmatmul.mubr.f32.gmra.mrb[0].mxu0 %v402
        %v562 = vpop.f32.mrb[0].mxu0
        %v563 = vadd.f32 0.0, %v562
        %v564 = vpop.f32.mrb[0].mxu0
        %565 = vmatprep.mubr.f32.mxu0 0.0
        %566 = vmatmul.mubr.f32.gmra.mrb[0].mxu0 %v407
        %v567 = vpop.f32.mrb[0].mxu0
        %v568 = vadd.f32 0.0, %v567
        %v569 = vpop.f32.mrb[0].mxu0
        %570 = vmatprep.mubr.f32.mxu0 0.0
        %571 = vmatmul.mubr.f32.gmra.mrb[0].mxu0 %v412
        %v572 = vpop.f32.mrb[0].mxu0
        %v573 = vadd.f32 0.0, %v572
        %v574 = vpop.f32.mrb[0].mxu0
        %575 = vmatprep.mubr.f32.mxu0 0.0
        %576 = vmatmul.mubr.f32.gmra.mrb[0].mxu0 %v417
        %v577 = vpop.f32.mrb[0].mxu0
        %v578 = vadd.f32 0.0, %v577
        %v579 = vpop.f32.mrb[0].mxu0
        %580 = vmatprep.mubr.f32.mxu0 0.0
        %581 = vmatmul.mubr.f32.gmra.mrb[0].mxu0 %v422
        %v582 = vpop.f32.mrb[0].mxu0
        %v583 = vadd.f32 0.0, %v582
        %v584 = vpop.f32.mrb[0].mxu0
        %585 = vmatprep.mubr.f32.mxu0 0.0
        %586 = vmatmul.mubr.f32.gmra.mrb[0].mxu0 %v427
        %v587 = vpop.f32.mrb[0].mxu0
        %v588 = vadd.f32 0.0, %v587
        %v589 = vpop.f32.mrb[0].mxu0
        %590 = vmatprep.mubr.f32.mxu0 0.0
        %591 = vmatmul.mubr.f32.gmra.mrb[0].mxu0 %v432
        %v592 = vpop.f32.mrb[0].mxu0
        %v593 = vadd.f32 0.0, %v592
        %v594 = vpop.f32.mrb[0].mxu0
        %595 = vmatprep.mubr.f32.mxu0 0.0
        %596 = vmatmul.mubr.f32.gmra.mrb[0].mxu0 %v437
        %v597 = vpop.f32.mrb[0].mxu0
        %v598 = vadd.f32 0.0, %v597
        %v599 = vpop.f32.mrb[0].mxu0
        %600 = vmatprep.mubr.f32.mxu0 0.0
        %601 = vmatmul.mubr.f32.gmra.mrb[0].mxu0 %v442
        %v602 = vpop.f32.mrb[0].mxu0
        %v603 = vadd.f32 0.0, %v602
        %v604 = vpop.f32.mrb[0].mxu0
        %605 = vmatprep.mubr.f32.mxu0 0.0
        %606 = vmatmul.mubr.f32.gmra.mrb[0].mxu0 %v447
        %v607 = vpop.f32.mrb[0].mxu0
        %v608 = vadd.f32 0.0, %v607
        %v609 = vpop.f32.mrb[0].mxu0
        %610 = vmatprep.mubr.f32.mxu0 0.0
        %611 = vmatmul.mubr.f32.gmra.mrb[0].mxu0 %v452
        %v612 = vpop.f32.mrb[0].mxu0
        %v613 = vadd.f32 0.0, %v612
        %v614 = vpop.f32.mrb[0].mxu0
        %615 = vmatprep.mubr.f32.mxu0 0.0
        %616 = vmatmul.mubr.f32.gmra.mrb[0].mxu0 %v457
        %v617 = vpop.f32.mrb[0].mxu0
        %v618 = vadd.f32 0.0, %v617
        %v619 = vpop.f32.mrb[0].mxu0
        %620 = vmatprep.mubr.f32.mxu0 0.0
        %621 = vmatmul.mubr.f32.gmra.mrb[0].mxu0 %v462
        %v622 = vpop.f32.mrb[0].mxu0
        %v623 = vadd.f32 0.0, %v622
        %v624 = vpop.f32.mrb[0].mxu0
        %625 = vdwg.mxu0
        %vm626 = vcmask 15360
        %627 = vst.msk [vmem:[%s238] sm:$0xff] %vm626, %v548
        %628 = vst.msk [vmem:[%s238 + $0x8] sm:$0xff] %vm626, %v553
        %629 = vst.msk [vmem:[%s238 + $0x10] sm:$0xff] %vm626, %v558
        %630 = vst.msk [vmem:[%s238 + $0x18] sm:$0xff] %vm626, %v563
        %631 = vst.msk [vmem:[%s238 + $0x20] sm:$0xff] %vm626, %v568
        %632 = vst.msk [vmem:[%s238 + $0x28] sm:$0xff] %vm626, %v573
        %633 = vst.msk [vmem:[%s238 + $0x30] sm:$0xff] %vm626, %v578
        %634 = vst.msk [vmem:[%s238 + $0x38] sm:$0xff] %vm626, %v583
        %635 = vst.msk [vmem:[%s238 + $0x40] sm:$0xff] %vm626, %v588
        %636 = vst.msk [vmem:[%s238 + $0x48] sm:$0xff] %vm626, %v593
        %637 = vst.msk [vmem:[%s238 + $0x50] sm:$0xff] %vm626, %v598
        %638 = vst.msk [vmem:[%s238 + $0x58] sm:$0xff] %vm626, %v603
        %639 = vst.msk [vmem:[%s238 + $0x60] sm:$0xff] %vm626, %v608
        %640 = vst.msk [vmem:[%s238 + $0x68] sm:$0xff] %vm626, %v613
        %641 = vst.msk [vmem:[%s238 + $0x70] sm:$0xff] %vm626, %v618
        %642 = vst.msk [vmem:[%s238 + $0x78] sm:$0xff] %vm626, %v623
        %v643 = vpack.c.bf16 %v392, %v387
        %v644 = vpack.c.bf16 %v402, %v397
        %v645 = vpack.c.bf16 %v412, %v407
        %v646 = vpack.c.bf16 %v422, %v417
        %v647 = vpack.c.bf16 %v432, %v427
        %v648 = vpack.c.bf16 %v442, %v437
        %v649 = vpack.c.bf16 %v452, %v447
        %v650 = vpack.c.bf16 %v462, %v457
        %v659 = vunpack.c.l.b16 %v643
        %v660 = vunpack.c.h.b16 %v643
        %v661 = vunpack.c.l.b16 %v644
        %v662 = vunpack.c.h.b16 %v644
        %v663 = vunpack.c.l.b16 %v645
        %v664 = vunpack.c.h.b16 %v645
        %v665 = vunpack.c.l.b16 %v646
        %v666 = vunpack.c.h.b16 %v646
        %v667 = vunpack.c.l.b16 %v647
        %v668 = vunpack.c.h.b16 %v647
        %v669 = vunpack.c.l.b16 %v648
        %v670 = vunpack.c.h.b16 %v648
        %v671 = vunpack.c.l.b16 %v649
        %v672 = vunpack.c.h.b16 %v649
        %v673 = vunpack.c.l.b16 %v650
        %v674 = vunpack.c.h.b16 %v650
        %v675 = vpack.c.b16 %v659, %v659
        %v676 = vpack.c.b16 %v660, %v660
        %v677 = vpack.c.b16 %v661, %v661
        %v678 = vpack.c.b16 %v662, %v662
        %v679 = vpack.c.b16 %v663, %v663
        %v680 = vpack.c.b16 %v664, %v664
        %v681 = vpack.c.b16 %v665, %v665
        %v682 = vpack.c.b16 %v666, %v666
        %v683 = vpack.c.b16 %v667, %v667
        %v684 = vpack.c.b16 %v668, %v668
        %v685 = vpack.c.b16 %v669, %v669
        %v686 = vpack.c.b16 %v670, %v670
        %v687 = vpack.c.b16 %v671, %v671
        %v688 = vpack.c.b16 %v672, %v672
        %v689 = vpack.c.b16 %v673, %v673
        %v690 = vpack.c.b16 %v674, %v674
        %707 = vst [vmem:[%s219] sm:$0xf] %v675
        %708 = vst [vmem:[%s219 + $0x4] sm:$0xf] %v676
        %709 = vst [vmem:[%s219 + $0x8] sm:$0xf] %v677
        %710 = vst [vmem:[%s219 + $0xc] sm:$0xf] %v678
        %711 = vst [vmem:[%s219 + $0x10] sm:$0xf] %v679
        %712 = vst [vmem:[%s219 + $0x14] sm:$0xf] %v680
        %713 = vst [vmem:[%s219 + $0x18] sm:$0xf] %v681
        %714 = vst [vmem:[%s219 + $0x1c] sm:$0xf] %v682
        %715 = vst [vmem:[%s219 + $0x20] sm:$0xf] %v683
        %716 = vst [vmem:[%s219 + $0x24] sm:$0xf] %v684
        %717 = vst [vmem:[%s219 + $0x28] sm:$0xf] %v685
        %718 = vst [vmem:[%s219 + $0x2c] sm:$0xf] %v686
        %719 = vst [vmem:[%s219 + $0x30] sm:$0xf] %v687
        %720 = vst [vmem:[%s219 + $0x34] sm:$0xf] %v688
        %721 = vst [vmem:[%s219 + $0x38] sm:$0xf] %v689
        %722 = vst [vmem:[%s219 + $0x3c] sm:$0xf] %v690
        %s723 = sand.u32 %s117, 1
        %s724 = scalar_lea.sflag [#allocation3], %s723
        %s725 = sand.u32 %s117, 1
        %s726 = smul.addr %s725, 64
        %s727 = scalar_lea.vmem [#allocation2], %s726
        %s728 = smul.u32 16, %s20
        %p729 = scmp.lt.s32.totalorder %s728, 31
        %s730 = scalar_select %p729, %s728, 31
        %s731 = smul.addr %s730, 8
        %s732 = scalar_lea.vmem %s5, %s731
        // Predicated region
        $region37: #{tpu_custom_call.1} parent=35 // pred_check
          %p733 = pneg %p127
        $region38: #{tpu_custom_call.1} parent=35 // pred_check_branch
          %735 = sbr.rel (%p733) target = $region40
        $region39: #{tpu_custom_call.1} parent=35 // pred_region
          %s736 = smul.u32 16, %s20
          %s738 = ssub.s32 1024, 1024
          %739 = vsyncadd %s724, %s738
          %s740 = smul.addr %s736, 64
          %s741 = scalar_lea.hbm %s4, %s740
          %s742 = sshll.u32 %s727, 4
          %s743 = int_to_ptr.vmem [resolvable:$true] %s742
          %748 = dma.vmem_to_hbm [thread:$0]  %s743, 1024, %s741, %s724, 64, 64, 4
        $region40: #{tpu_custom_call.1} parent=35 // pred_fallthru
          _
        // Predicated region
        $region41: #{tpu_custom_call.1} parent=35 // pred_check
          %p749 = pneg %p153
        $region42: #{tpu_custom_call.1} parent=35 // pred_check_branch
          %751 = sbr.rel (%p749) target = $region44
        $region43: #{tpu_custom_call.1} parent=35 // pred_region
          %s752 = smul.u32 16, %s20
        $region44: #{tpu_custom_call.1} parent=35 // pred_fallthru
          _
      $region36: #{tpu_custom_call.1} parent=5 // pred_fallthru
        _
      %p753 = scmp.le.s32.totalorder 2, %s15
      // Predicated region
      $region45: #{tpu_custom_call.1} parent=5 // pred_check
        %p754 = pneg %p753
      $region46: #{tpu_custom_call.1} parent=5 // pred_check_branch
        %756 = sbr.rel (%p754) target = $region48
      $region47: #{tpu_custom_call.1} parent=5 // pred_region
        %s757 = ssub.s32 %s15, 2
        // Predicated region
        $region49: #{tpu_custom_call.1} parent=47 // pred_check
          %p758 = pneg %p133
        $region50: #{tpu_custom_call.1} parent=47 // pred_check_branch
          %760 = sbr.rel (%p758) target = $region52
        $region51: #{tpu_custom_call.1} parent=47 // pred_region
          %s761 = sand.u32 %s118, 1
          %s762 = scalar_lea.sflag [#allocation3], %s761
          %s763 = sand.u32 %s118, 1
          %s764 = smul.addr %s763, 64
          %s765 = scalar_lea.vmem [#allocation2], %s764
          %766 = dma.done %s762, 1024
        $region52: #{tpu_custom_call.1} parent=47 // pred_fallthru
          _
        // Predicated region
        $region53: #{tpu_custom_call.1} parent=47 // pred_check
          %p767 = pneg %p159
        $region54: #{tpu_custom_call.1} parent=47 // pred_check_branch
          %769 = sbr.rel (%p767) target = $region56
        $region55: #{tpu_custom_call.1} parent=47 // pred_region
          %s770 = smul.u32 16, %s21
          %p771 = scmp.lt.s32.totalorder %s770, 31
          %s772 = scalar_select %p771, %s770, 31
          %s773 = smul.addr %s772, 8
          %s774 = scalar_lea.vmem %s5, %s773
        $region56: #{tpu_custom_call.1} parent=47 // pred_fallthru
          _
      $region48: #{tpu_custom_call.1} parent=5 // pred_fallthru
        _
    $region6: #{tpu_custom_call.1} parent=1 // loop_footer
      %s19 = sadd.s32 1, %s15
    $region7: #{tpu_custom_call.1} parent=1 // loop_footer_branch
      %14 = sbr.rel target = $region3
    $region8: #{tpu_custom_call.1} parent=1 // loop_exit
      _
    %775 = vsyncpa [#allocation3], 1
    %s776 = scalar_lea.sflag [#allocation3], 1
    %777 = vsyncpa %s776, 1

</llo_original>
